<compile_context>
chip_gen: v6e
topology: v6e:2x2x1
jax: 0.10.0
libtpu: 0.0.40
codegen_flags: <defaults>
</compile_context>

<pallas_src>
import functools

import jax
import jax.numpy as jnp
from jax.experimental import pallas as pl
from jax.experimental.pallas import tpu as pltpu


def _kd_loss_kernel(stu_ref, tea_ref, rowkl_ref, *, inv_t):
    inv_T = jnp.float32(inv_t)

    # Up-cast inside the kernel; scale by 1/T with a multiply (no divides).
    stu = stu_ref[...].astype(jnp.float32) * inv_T   # (TB, C)
    tea = tea_ref[...].astype(jnp.float32) * inv_T   # (TB, C)

    # log_softmax(stu / T, axis=1), numerically stable.
    s_max = jnp.max(stu, axis=1, keepdims=True)
    s_shift = stu - s_max
    s_lse = jnp.log(jnp.sum(jnp.exp(s_shift), axis=1, keepdims=True))
    log_p_s = s_shift - s_lse                         # (TB, C)

    # softmax(tea / T, axis=1) pieces, without the per-element divide.
    t_max = jnp.max(tea, axis=1, keepdims=True)
    t_shift = tea - t_max
    t_exp = jnp.exp(t_shift)                          # (TB, C)
    t_sum = jnp.sum(t_exp, axis=1, keepdims=True)     # (TB, 1)
    log_p_t = t_shift - jnp.log(t_sum)                # (TB, C)

    # Per-row KL:  sum_c softmax_t * (log_p_t - log_p_s)
    #           =  (1 / t_sum) * sum_c t_exp * (log_p_t - log_p_s)
    # Only TB reciprocals per tile (EUP approx slot), pure VALU elsewhere.
    row_num = jnp.sum(t_exp * (log_p_t - log_p_s), axis=1, keepdims=True)
    row_kl = row_num * pl.reciprocal(t_sum, approx=True)        # (TB, 1)

    rowkl_ref[...] = row_kl.astype(rowkl_ref.dtype)


def _pick_batch_tile(B, C, itemsize, max_rows_per_tile):
    # Budget: 2 inputs x 2 pipeline buffers x TB x C x itemsize <= ~16 MiB,
    # which keeps double-buffering alive under the default scoped VMEM on
    # v5e (16 MiB) and v6e/v7x (32 MiB) without touching vmem_limit_bytes.
    budget_rows = max(1, (16 * 1024 * 1024) // (4 * C * itemsize))
    tb = min(B, max_rows_per_tile, budget_rows)
    # Block second-minor dim must be a multiple of 8 or equal the full dim.
    tb = (tb // 8) * 8
    while tb >= 8 and B % tb != 0:
        tb -= 8
    if tb < 8 or B % tb != 0:
        tb = B                      # whole-array block always legal
    return tb


def kd_loss(stu_pred, tea_pred, temperature, *, max_rows_per_tile=1024):
    """Knowledge-distillation loss. Inputs: (B, C) logits. Returns scalar f32."""
    assert stu_pred.shape == tea_pred.shape and stu_pred.ndim == 2
    B, C = stu_pred.shape
    itemsize = max(jnp.dtype(stu_pred.dtype).itemsize,
                   jnp.dtype(tea_pred.dtype).itemsize)
    tb = _pick_batch_tile(B, C, itemsize, max_rows_per_tile)

    kernel = functools.partial(_kd_loss_kernel, inv_t=1.0 / float(temperature))

    row_kl = pl.pallas_call(
        kernel,
        out_shape=jax.ShapeDtypeStruct((B, 1), jnp.float32),
        grid_spec=pltpu.PrefetchScalarGridSpec(
            num_scalar_prefetch=0,
            grid=(B // tb,),
            in_specs=[
                pl.BlockSpec((tb, C), lambda i: (i, 0)),
                pl.BlockSpec((tb, C), lambda i: (i, 0)),
            ],
            out_specs=pl.BlockSpec((tb, 1), lambda i: (i, 0)),
        ),
        compiler_params=pltpu.CompilerParams(
            dimension_semantics=("parallel",)),
    )(stu_pred, tea_pred)

    T = jnp.float32(temperature)
    # Tiny epilogue in XLA: sum of B per-row KL values, then the T^2 / B scale.
    return jnp.sum(row_kl) * T * T / jnp.float32(B)


def _kd_loss_ref(stu_pred, tea_pred, temperature):
    """Pure-JAX reference for sanity checking."""
    T = float(temperature)
    s = jax.nn.log_softmax(stu_pred.astype(jnp.float32) / T, axis=1)
    lt = jax.nn.log_softmax(tea_pred.astype(jnp.float32) / T, axis=1)
    t = jnp.exp(lt)
    kl = jnp.sum(t * (lt - s))
    return kl * T * T / stu_pred.shape[0]


if __name__ == "__main__":
    key = jax.random.PRNGKey(0)
    k1, k2, k3, k4 = jax.random.split(key, 4)

    T = 4.0  # distillation temperature

    # Case 1: single-tile shape (one (8,128) vreg tile).
    B1, C1 = 8, 128
    stu1 = jax.random.normal(k1, (B1, C1), dtype=jnp.float32)
    tea1 = jax.random.normal(k2, (B1, C1), dtype=jnp.float32)
    loss1 = jax.jit(lambda a, b: kd_loss(a, b, T))(stu1, tea1)
    jax.block_until_ready(loss1)
    ref1 = _kd_loss_ref(stu1, tea1, T)
    # approx=True reciprocal -> compare with a slightly relaxed tolerance.
    assert jnp.allclose(loss1, ref1, rtol=1e-3, atol=1e-3), (loss1, ref1)

    # Case 2: exercises the batch grid (grid=(4,)) with the parallel axis.
    B2, C2 = 32, 128
    stu2 = jax.random.normal(k3, (B2, C2), dtype=jnp.float32)
    tea2 = jax.random.normal(k4, (B2, C2), dtype=jnp.float32)
    loss2 = jax.jit(
        lambda a, b: kd_loss(a, b, T, max_rows_per_tile=8))(stu2, tea2)
    jax.block_until_ready(loss2)
    ref2 = _kd_loss_ref(stu2, tea2, T)
    assert jnp.allclose(loss2, ref2, rtol=1e-3, atol=1e-3), (loss2, ref2)

    print("KERNEL_OK")
</pallas_src>

<mosaic_0001>
module attributes {stable_mosaic.version = 11 : i64} {
  func.func @_kd_loss_kernel(%arg0: i32, %arg1: memref<8x128xf32, #tpu.memory_space<vmem>>, %arg2: memref<8x128xf32, #tpu.memory_space<vmem>>, %arg3: memref<8x1xf32, #tpu.memory_space<vmem>>) attributes {dimension_semantics = [#tpu.dimension_semantics<parallel>], iteration_bounds = array<i64: 1>, scalar_prefetch = 0 : i64, scratch_operands = 0 : i64, tpu.core_type = #tpu.core_type<tc>, window_params = [{transform_indices = @transform_0, window_bounds = array<i64: 8, 128>}, {transform_indices = @transform_1, window_bounds = array<i64: 8, 128>}, {transform_indices = @transform_2, window_bounds = array<i64: 8, 1>}]} {
    %c0 = arith.constant 0 : index
    %c0_0 = arith.constant 0 : index
    %0 = vector.load %arg1[%c0, %c0_0] : memref<8x128xf32, #tpu.memory_space<vmem>>, vector<8x128xf32>
    %cst = arith.constant 2.500000e-01 : f32
    %1 = vector.broadcast %cst : f32 to vector<8x128xf32>
    %2 = arith.mulf %0, %1 : vector<8x128xf32>
    %c0_1 = arith.constant 0 : index
    %c0_2 = arith.constant 0 : index
    %3 = vector.load %arg2[%c0_1, %c0_2] : memref<8x128xf32, #tpu.memory_space<vmem>>, vector<8x128xf32>
    %cst_3 = arith.constant 2.500000e-01 : f32
    %4 = vector.broadcast %cst_3 : f32 to vector<8x128xf32>
    %5 = arith.mulf %3, %4 : vector<8x128xf32>
    %cst_4 = arith.constant dense<0xFF800000> : vector<8xf32>
    %6 = vector.multi_reduction <maximumf>, %2, %cst_4 [1] : vector<8x128xf32> to vector<8xf32>
    %7 = vector.shape_cast %6 : vector<8xf32> to vector<8x1xf32>
    %8 = vector.broadcast %7 : vector<8x1xf32> to vector<8x128xf32>
    %9 = arith.subf %2, %8 : vector<8x128xf32>
    %10 = math.exp %9 : vector<8x128xf32>
    %cst_5 = arith.constant dense<0.000000e+00> : vector<8xf32>
    %11 = vector.multi_reduction <add>, %10, %cst_5 [1] : vector<8x128xf32> to vector<8xf32>
    %12 = vector.shape_cast %11 : vector<8xf32> to vector<8x1xf32>
    %13 = math.log %12 : vector<8x1xf32>
    %14 = vector.broadcast %13 : vector<8x1xf32> to vector<8x128xf32>
    %15 = arith.subf %9, %14 : vector<8x128xf32>
    %cst_6 = arith.constant dense<0xFF800000> : vector<8xf32>
    %16 = vector.multi_reduction <maximumf>, %5, %cst_6 [1] : vector<8x128xf32> to vector<8xf32>
    %17 = vector.shape_cast %16 : vector<8xf32> to vector<8x1xf32>
    %18 = vector.broadcast %17 : vector<8x1xf32> to vector<8x128xf32>
    %19 = arith.subf %5, %18 : vector<8x128xf32>
    %20 = math.exp %19 : vector<8x128xf32>
    %cst_7 = arith.constant dense<0.000000e+00> : vector<8xf32>
    %21 = vector.multi_reduction <add>, %20, %cst_7 [1] : vector<8x128xf32> to vector<8xf32>
    %22 = vector.shape_cast %21 : vector<8xf32> to vector<8x1xf32>
    %23 = math.log %22 : vector<8x1xf32>
    %24 = vector.broadcast %23 : vector<8x1xf32> to vector<8x128xf32>
    %25 = arith.subf %19, %24 : vector<8x128xf32>
    %26 = arith.subf %25, %15 : vector<8x128xf32>
    %27 = arith.mulf %20, %26 : vector<8x128xf32>
    %cst_8 = arith.constant dense<0.000000e+00> : vector<8xf32>
    %28 = vector.multi_reduction <add>, %27, %cst_8 [1] : vector<8x128xf32> to vector<8xf32>
    %29 = vector.shape_cast %28 : vector<8xf32> to vector<8x1xf32>
    %30 = tpu.reciprocal %22 {approx = true} : vector<8x1xf32> -> vector<8x1xf32>
    %31 = arith.mulf %29, %30 : vector<8x1xf32>
    %c0_9 = arith.constant 0 : index
    %c0_10 = arith.constant 0 : index
    %32 = vector.load %arg3[%c0_9, %c0_10] : memref<8x1xf32, #tpu.memory_space<vmem>>, vector<8x1xf32>
    tpu.vector_store %arg3[%c0_9, %c0_10], %31 {strides = array<i32>} : memref<8x1xf32, #tpu.memory_space<vmem>>, vector<8x1xf32>,
    return
  }
  func.func @transform_0(%arg0: i32) -> (i32, i32) {
    %c0_i32 = arith.constant 0 : i32
    %c0_i32_0 = arith.constant 0 : i32
    return %arg0, %c0_i32 : i32, i32
  }
  func.func @transform_1(%arg0: i32) -> (i32, i32) {
    %c0_i32 = arith.constant 0 : i32
    %c0_i32_0 = arith.constant 0 : i32
    return %arg0, %c0_i32 : i32, i32
  }
  func.func @transform_2(%arg0: i32) -> (i32, i32) {
    %c0_i32 = arith.constant 0 : i32
    %c0_i32_0 = arith.constant 0 : i32
    return %arg0, %c0_i32 : i32, i32
  }
}

</mosaic_0001>

<llo_original>
// kernel: _lambda_.1
$region0: #{_lambda_.1}
  #allocation0 [shape = 'u32[]', space=smem, size = 0x4, offset = 0x4, fixed_abs, tag = 'smem constant byte address 0x4 - core index']
  #allocation1 [shape = 'u32[144,128]{1,0:T(1,128)}', space=vmem, size = 0x12000, scoped, tag = 'internal scratch']
  %s0 = inlined_call_operand.hbm [shape: f32[8,128], index: 0, kind: input, shape index: {}]
  %s1 = inlined_call_operand.hbm [shape: f32[8,128], index: 1, kind: input, shape index: {}]
  %s2 = inlined_call_operand.vmem [shape: f32[8,1], index: 2, kind: output, shape index: {}]
  %s3 = sld [smem:[#allocation0]]
  $region26: #{_lambda_.1} parent=0
    _
  %s5 = ssub.s32 1, %s3
  %s6 = scalar_select 0, %s5, %s3
  $region1: #{_lambda_.1} parent=0
    #allocation2 [shape = 'u8[4096]{0}', space=vmem, size = 0x1000, scoped, tag = 'input window, operand 0, single buffered']
    #allocation3 [shape = 's32[1]{0}', space=sflag, size = 0x4, scoped, tag = 'scoped memory for _lambda_.1']
    #allocation4 [shape = 'u8[4096]{0}', space=vmem, size = 0x1000, scoped, tag = 'input window, operand 1, single buffered']
    #allocation5 [shape = 's32[1]{0}', space=sflag, size = 0x4, scoped, tag = 'scoped memory for _lambda_.1']
    %7 = vsyncpa [#allocation3], 0
    %8 = vsyncpa [#allocation5], 0
    // Predicated region
    $region2: #{_lambda_.1} parent=1 // pred_check
      _
    $region3: #{_lambda_.1} parent=1 // pred_check_branch
      %10 = sbr.rel (0) target = $region5
    $region4: #{_lambda_.1} parent=1 // pred_region
      %s12 = ssub.s32 128, 128
      %13 = vsyncadd [#allocation3], %s12
      %s15 = sshll.u32 [#allocation2], 4
      %s16 = int_to_ptr.vmem [resolvable:$true] %s15
      %18 = dma.hbm_to_vmem [thread:$0]  %s0, 128, %s16, [#allocation3]
    $region5: #{_lambda_.1} parent=1 // pred_fallthru
      _
    // Predicated region
    $region6: #{_lambda_.1} parent=1 // pred_check
      _
    $region7: #{_lambda_.1} parent=1 // pred_check_branch
      %20 = sbr.rel (0) target = $region9
    $region8: #{_lambda_.1} parent=1 // pred_region
      %s22 = ssub.s32 128, 128
      %23 = vsyncadd [#allocation5], %s22
      %s25 = sshll.u32 [#allocation4], 4
      %s26 = int_to_ptr.vmem [resolvable:$true] %s25
      %28 = dma.hbm_to_vmem [thread:$0]  %s1, 128, %s26, [#allocation5]
    $region9: #{_lambda_.1} parent=1 // pred_fallthru
      _
    // Predicated region
    $region10: #{_lambda_.1} parent=1 // pred_check
      _
    $region11: #{_lambda_.1} parent=1 // pred_check_branch
      %30 = sbr.rel (0) target = $region13
    $region12: #{_lambda_.1} parent=1 // pred_region
      %31 = dma.done [#allocation3], 128
    $region13: #{_lambda_.1} parent=1 // pred_fallthru
      _
    // Predicated region
    $region14: #{_lambda_.1} parent=1 // pred_check
      _
    $region15: #{_lambda_.1} parent=1 // pred_check_branch
      %33 = sbr.rel (0) target = $region17
    $region16: #{_lambda_.1} parent=1 // pred_region
      %34 = dma.done [#allocation5], 128
    $region17: #{_lambda_.1} parent=1 // pred_fallthru
      _
    %v35 = vld [vmem:[#allocation2] sm:$0xff]
    %v36 = vmul.f32 %v35, 0.25
    %v37 = vld [vmem:[#allocation4] sm:$0xff]
    %v38 = vmul.f32 %v37, 0.25
    %39 = vmax.xlane.f32.xlu0 %v36
    %v40 = vpop.xlane.xlu0 %39
    %v41 = vsub.f32 %v36, %v40
    %v42 = vmul.f32 %v41, 1.442695
    %v43 = vpow.pop %v42
    %44 = vadd.xlane.f32.xlu0 %v43
    %v45 = vpop.xlane.xlu0 %44
    %v46 = vlog2.pop %v45
    %v47 = vmul.f32 %v46, 0.6931472
    %v48 = vsub.f32 %v41, %v47
    %49 = vmax.xlane.f32.xlu0 %v38
    %v50 = vpop.xlane.xlu0 %49
    %v51 = vsub.f32 %v38, %v50
    %v52 = vmul.f32 %v51, 1.442695
    %v53 = vpow.pop %v52
    %54 = vadd.xlane.f32.xlu0 %v53
    %v55 = vpop.xlane.xlu0 %54
    %v56 = vlog2.pop %v55
    %v57 = vmul.f32 %v56, 0.6931472
    %v58 = vsub.f32 %v51, %v57
    %v59 = vsub.f32 %v58, %v48
    %v60 = vmul.f32 %v53, %v59
    %61 = vadd.xlane.f32.xlu0 %v60
    %v62 = vpop.xlane.xlu0 %61
    %v63 = vrcp.pop %v55
    %v64 = vmul.f32 %v62, %v63
    %vm65 = vcmask 7168
    %66 = vst.msk [vmem:[%s2] sm:$0xff] %vm65, %v64
    // Predicated region
    $region18: #{_lambda_.1} parent=1 // pred_check
      _
    $region19: #{_lambda_.1} parent=1 // pred_check_branch
      %68 = sbr.rel (0) target = $region21
    $region20: #{_lambda_.1} parent=1 // pred_region
      _
    $region21: #{_lambda_.1} parent=1 // pred_fallthru
      _
    // Predicated region
    $region22: #{_lambda_.1} parent=1 // pred_check
      _
    $region23: #{_lambda_.1} parent=1 // pred_check_branch
      %70 = sbr.rel (0) target = $region25
    $region24: #{_lambda_.1} parent=1 // pred_region
      _
    $region25: #{_lambda_.1} parent=1 // pred_fallthru
      _
    %71 = vsyncpa [#allocation3], 1
    %72 = vsyncpa [#allocation5], 1

</llo_original>
